<compile_context>
chip_gen: v5e
topology: v5e:2x2
jax: 0.10.0
libtpu: 0.0.40
codegen_flags: <defaults>
</compile_context>

<pallas_src>
import functools

import jax
import jax.numpy as jnp
from jax.experimental import pallas as pl
from jax.experimental.pallas import tpu as pltpu


_NEG_BIG = -1e30  # "minus infinity" that stays finite in f32 arithmetic


def _round_up(a, b):
    return ((a + b - 1) // b) * b


def _sdot_lse_kernel(x_ref, yt_ref, c_ref, scal_ref, out_ref, m_ref, l_ref, *, reg):
    # reg_param > 0 path: online logsumexp over N chunks.
    j = pl.program_id(1)
    nj = pl.num_programs(1)

    @pl.when(j == 0)
    def _():
        m_ref[...] = jnp.full(m_ref.shape, _NEG_BIG, m_ref.dtype)
        l_ref[...] = jnp.zeros(l_ref.shape, l_ref.dtype)

    inv_mean = scal_ref[0]   # 1 / mean
    psi_mean = scal_ref[1]   # mean(psi)

    x = x_ref[...]                                                      # (bm, D)
    xy = jnp.dot(x, yt_ref[...], preferred_element_type=jnp.float32)    # (bm, bn) on MXU
    z = xy + c_ref[...]                                                 # single add / element

    m_prev = m_ref[...]
    m_new = jnp.maximum(m_prev, jnp.max(z, axis=1, keepdims=True))      # (bm, 1)
    p = jnp.exp(z - m_new)
    alpha = jnp.exp(m_prev - m_new)
    l_ref[...] = alpha * l_ref[...] + jnp.sum(p, axis=1, keepdims=True)
    m_ref[...] = m_new

    @pl.when(j == nj - 1)
    def _():
        x_sq = jnp.sum(x * x, axis=1, keepdims=True)                    # (bm, 1)
        lse = m_ref[...] + jnp.log(l_ref[...])
        out_ref[...] = (-reg * lse + x_sq * inv_mean + psi_mean).astype(out_ref.dtype)


def _sdot_min_kernel(x_ref, yt_ref, c_ref, scal_ref, out_ref, m_ref):
    # reg_param == 0 path: running max of z  (min of cost - psi == x_sq/mean - max z).
    j = pl.program_id(1)
    nj = pl.num_programs(1)

    @pl.when(j == 0)
    def _():
        m_ref[...] = jnp.full(m_ref.shape, _NEG_BIG, m_ref.dtype)

    inv_mean = scal_ref[0]
    psi_mean = scal_ref[1]

    x = x_ref[...]
    xy = jnp.dot(x, yt_ref[...], preferred_element_type=jnp.float32)
    z = xy + c_ref[...]
    m_ref[...] = jnp.maximum(m_ref[...], jnp.max(z, axis=1, keepdims=True))

    @pl.when(j == nj - 1)
    def _():
        x_sq = jnp.sum(x * x, axis=1, keepdims=True)
        out_ref[...] = (x_sq * inv_mean - m_ref[...] + psi_mean).astype(out_ref.dtype)


def sdot_forward(source_data, target_data, psi, reg_param, *, block_m=256, block_n=512):
    """Pallas implementation of SDOT.forward.

    source_data: (M, D) float32
    target_data: (N, D) float32  (module stores its transpose (D, N))
    psi:         (N,)   float32  parameter
    reg_param:   Python float (static; selects logsumexp vs min path)
    returns:     (M,)   float32
    """
    source = source_data.astype(jnp.float32)
    target = target_data.astype(jnp.float32)
    psi = psi.astype(jnp.float32)

    M, D = source.shape
    N = target.shape[0]

    yt = target.T                                  # (D, N) == module's transpose_data
    y_sq = jnp.sum(yt * yt, axis=0)                # (N,)
    mean_value = jnp.mean(y_sq)                    # buffer 'mean_value'
    inv_mean = 1.0 / mean_value
    psi_mean = jnp.mean(psi)

    reg_param = float(reg_param)
    if reg_param > 0:
        scale = 2.0 * inv_mean / reg_param                   # folded into yt below
        c = psi / reg_param - y_sq * (inv_mean / reg_param)  # per-column bias
        kernel = functools.partial(_sdot_lse_kernel, reg=reg_param)
    else:
        scale = 2.0 * inv_mean
        c = psi - y_sq * inv_mean
        kernel = _sdot_min_kernel

    # Fold the scale into the (small, D x N) streamed operand so the kernel's
    # per-element work is a single add instead of mul+add (no f32 FMA on v5e/v6e VPU).
    yt = yt * scale

    # Tile sizes: big by default, clamped so tiny problems don't over-pad.
    block_m = max(8, min(block_m, _round_up(M, 8)))
    block_n = max(128, min(block_n, _round_up(N, 128)))
    m_pad = _round_up(M, block_m)
    n_pad = _round_up(N, block_n)

    if m_pad != M:
        source = jnp.pad(source, ((0, m_pad - M), (0, 0)))
    if n_pad != N:
        yt = jnp.pad(yt, ((0, 0), (0, n_pad - N)))
        # Padded columns get a huge negative bias: exp() -> 0, never wins max.
        c = jnp.pad(c, (0, n_pad - N), constant_values=_NEG_BIG)

    c2 = c.reshape(1, n_pad)
    scalars = jnp.stack([inv_mean, psi_mean]).astype(jnp.float32)

    if reg_param > 0:
        scratch = [
            pltpu.VMEM((block_m, 1), jnp.float32),   # running max m
            pltpu.VMEM((block_m, 1), jnp.float32),   # running sum-of-exp l
        ]
    else:
        scratch = [pltpu.VMEM((block_m, 1), jnp.float32)]  # running max

    grid = (m_pad // block_m, n_pad // block_n)

    out = pl.pallas_call(
        kernel,
        out_shape=jax.ShapeDtypeStruct((m_pad, 1), jnp.float32),
        grid_spec=pltpu.PrefetchScalarGridSpec(
            num_scalar_prefetch=0,
            grid=grid,
            in_specs=[
                pl.BlockSpec((block_m, D), lambda i, j: (i, 0)),        # x tile (resident over j)
                pl.BlockSpec((D, block_n), lambda i, j: (0, j)),        # scaled yt chunk (streamed)
                pl.BlockSpec((1, block_n), lambda i, j: (0, j)),        # combined psi/y_sq bias
                pl.BlockSpec(memory_space=pltpu.MemorySpace.SMEM),      # scalars
            ],
            out_specs=pl.BlockSpec((block_m, 1), lambda i, j: (i, 0)),  # revisit over j
            scratch_shapes=scratch,
        ),
        compiler_params=pltpu.CompilerParams(
            dimension_semantics=("parallel", "arbitrary"),
        ),
    )(source, yt, c2, scalars)
    return out[:M, 0]


def sdot_reference(source_data, target_data, psi, reg_param):
    """Pure-JAX reference mirroring the PyTorch forward exactly."""
    yt = target_data.T
    mean_value = jnp.mean(jnp.sum(yt ** 2, axis=0, keepdims=True))
    cost_xy = (
        jnp.sum(source_data ** 2, axis=1, keepdims=True)
        + jnp.sum(yt ** 2, axis=0, keepdims=True)
        - 2.0 * source_data @ yt
    ) / mean_value
    if reg_param > 0:
        z = (psi[None, :] - cost_xy) / reg_param
        return -reg_param * jax.nn.logsumexp(z, axis=1) + jnp.mean(psi)
    else:
        return jnp.min(cost_xy - psi[None, :], axis=1) + jnp.mean(psi)


if __name__ == "__main__":
    key = jax.random.PRNGKey(0)
    k_src, k_tgt, k_psi, k_src2, k_tgt2, k_psi2 = jax.random.split(key, 6)

    # --- small case matching the module's toy scale ---
    M, N, D = 16, 8, 4
    reg_param = 0.1

    source = jax.random.normal(k_src, (M, D), dtype=jnp.float32)
    target = jax.random.normal(k_tgt, (N, D), dtype=jnp.float32)
    psi = 0.1 * jax.random.normal(k_psi, (N,), dtype=jnp.float32)

    out = jax.block_until_ready(sdot_forward(source, target, psi, reg_param))
    ref = sdot_reference(source, target, psi, reg_param)
    assert out.shape == (M,)
    assert jnp.allclose(out, ref, atol=1e-4, rtol=1e-4), (out, ref)

    # reg_param == 0 (min) path
    out0 = jax.block_until_ready(sdot_forward(source, target, psi, 0.0))
    ref0 = sdot_reference(source, target, psi, 0.0)
    assert jnp.allclose(out0, ref0, atol=1e-4, rtol=1e-4), (out0, ref0)

    # --- slightly larger, non-divisible case: exercises padding + multi-chunk online LSE ---
    M2, N2, D2 = 300, 200, 16
    source2 = jax.random.normal(k_src2, (M2, D2), dtype=jnp.float32)
    target2 = jax.random.normal(k_tgt2, (N2, D2), dtype=jnp.float32)
    psi2 = 0.1 * jax.random.normal(k_psi2, (N2,), dtype=jnp.float32)

    out2 = jax.block_until_ready(
        sdot_forward(source2, target2, psi2, reg_param, block_m=128, block_n=128)
    )
    ref2 = sdot_reference(source2, target2, psi2, reg_param)
    assert out2.shape == (M2,)
    assert jnp.allclose(out2, ref2, atol=1e-4, rtol=1e-4), (out2, ref2)

    out2m = jax.block_until_ready(
        sdot_forward(source2, target2, psi2, 0.0, block_m=128, block_n=128)
    )
    ref2m = sdot_reference(source2, target2, psi2, 0.0)
    assert jnp.allclose(out2m, ref2m, atol=1e-4, rtol=1e-4), (out2m, ref2m)

    print("KERNEL_OK")
</pallas_src>

<mosaic_0001>
module attributes {stable_mosaic.version = 11 : i64} {
  func.func @_sdot_lse_kernel(%arg0: i32, %arg1: i32, %arg2: memref<16x4xf32, #tpu.memory_space<vmem>>, %arg3: memref<4x128xf32, #tpu.memory_space<vmem>>, %arg4: memref<1x128xf32, #tpu.memory_space<vmem>>, %arg5: memref<2xf32, #tpu.memory_space<smem>>, %arg6: memref<16x1xf32, #tpu.memory_space<vmem>>, %arg7: memref<16x1xf32, #tpu.memory_space<vmem>>, %arg8: memref<16x1xf32, #tpu.memory_space<vmem>>) attributes {dimension_semantics = [#tpu.dimension_semantics<parallel>, #tpu.dimension_semantics<arbitrary>], iteration_bounds = array<i64: 1, 1>, scalar_prefetch = 0 : i64, scratch_operands = 2 : i64, tpu.core_type = #tpu.core_type<tc>, window_params = [{transform_indices = @transform_0, window_bounds = array<i64: 16, 4>}, {transform_indices = @transform_1, window_bounds = array<i64: 4, 128>}, {transform_indices = @transform_2, window_bounds = array<i64: 1, 128>}, {transform_indices = @transform_3, window_bounds = array<i64: 2>}, {transform_indices = @transform_4, window_bounds = array<i64: 16, 1>}]} {
    %c0_i32 = arith.constant 0 : i32
    %0 = arith.cmpi eq, %arg1, %c0_i32 : i32
    %1 = arith.extui %0 : i1 to i32
    %c0_i32_0 = arith.constant 0 : i32
    %2 = arith.cmpi ne, %1, %c0_i32_0 : i32
    scf.if %2 {
      %cst_19 = arith.constant -1.000000e+30 : f32
      %30 = vector.broadcast %cst_19 : f32 to vector<16x1xf32>
      %c0_20 = arith.constant 0 : index
      %c0_21 = arith.constant 0 : index
      %31 = vector.load %arg7[%c0_20, %c0_21] : memref<16x1xf32, #tpu.memory_space<vmem>>, vector<16x1xf32>
      tpu.vector_store %arg7[%c0_20, %c0_21], %30 {strides = array<i32>} : memref<16x1xf32, #tpu.memory_space<vmem>>, vector<16x1xf32>,
      %cst_22 = arith.constant 0.000000e+00 : f32
      %32 = vector.broadcast %cst_22 : f32 to vector<16x1xf32>
      %c0_23 = arith.constant 0 : index
      %c0_24 = arith.constant 0 : index
      %33 = vector.load %arg8[%c0_23, %c0_24] : memref<16x1xf32, #tpu.memory_space<vmem>>, vector<16x1xf32>
      tpu.vector_store %arg8[%c0_23, %c0_24], %32 {strides = array<i32>} : memref<16x1xf32, #tpu.memory_space<vmem>>, vector<16x1xf32>,
    } else {
    }
    %c0 = arith.constant 0 : index
    %3 = memref.load %arg5[%c0] : memref<2xf32, #tpu.memory_space<smem>>
    %c1 = arith.constant 1 : index
    %4 = memref.load %arg5[%c1] : memref<2xf32, #tpu.memory_space<smem>>
    %c0_1 = arith.constant 0 : index
    %c0_2 = arith.constant 0 : index
    %5 = vector.load %arg2[%c0_1, %c0_2] : memref<16x4xf32, #tpu.memory_space<vmem>>, vector<16x4xf32>
    %c0_3 = arith.constant 0 : index
    %c0_4 = arith.constant 0 : index
    %6 = vector.load %arg3[%c0_3, %c0_4] : memref<4x128xf32, #tpu.memory_space<vmem>>, vector<4x128xf32>
    %cst = arith.constant dense<0.000000e+00> : vector<16x128xf32>
    %7 = tpu.matmul %5, %6, %cst {dimension_numbers = #tpu.dot_dimension_numbers<[1], [0], [0], [1], [0, 0, 1, 1], [], []>} : vector<16x4xf32>, vector<4x128xf32>, vector<16x128xf32> -> vector<16x128xf32>
    %c0_5 = arith.constant 0 : index
    %c0_6 = arith.constant 0 : index
    %8 = vector.load %arg4[%c0_5, %c0_6] : memref<1x128xf32, #tpu.memory_space<vmem>>, vector<1x128xf32>
    %9 = vector.broadcast %8 : vector<1x128xf32> to vector<16x128xf32>
    %10 = arith.addf %7, %9 : vector<16x128xf32>
    %c0_7 = arith.constant 0 : index
    %c0_8 = arith.constant 0 : index
    %11 = vector.load %arg7[%c0_7, %c0_8] : memref<16x1xf32, #tpu.memory_space<vmem>>, vector<16x1xf32>
    %cst_9 = arith.constant dense<0xFF800000> : vector<16xf32>
    %12 = vector.multi_reduction <maximumf>, %10, %cst_9 [1] : vector<16x128xf32> to vector<16xf32>
    %13 = vector.shape_cast %12 : vector<16xf32> to vector<16x1xf32>
    %14 = arith.maximumf %11, %13 : vector<16x1xf32>
    %15 = vector.broadcast %14 : vector<16x1xf32> to vector<16x128xf32>
    %16 = arith.subf %10, %15 : vector<16x128xf32>
    %17 = math.exp %16 : vector<16x128xf32>
    %18 = arith.subf %11, %14 : vector<16x1xf32>
    %19 = math.exp %18 : vector<16x1xf32>
    %c0_10 = arith.constant 0 : index
    %c0_11 = arith.constant 0 : index
    %20 = vector.load %arg8[%c0_10, %c0_11] : memref<16x1xf32, #tpu.memory_space<vmem>>, vector<16x1xf32>
    %21 = arith.mulf %19, %20 : vector<16x1xf32>
    %cst_12 = arith.constant dense<0.000000e+00> : vector<16xf32>
    %22 = vector.multi_reduction <add>, %17, %cst_12 [1] : vector<16x128xf32> to vector<16xf32>
    %23 = vector.shape_cast %22 : vector<16xf32> to vector<16x1xf32>
    %24 = arith.addf %21, %23 : vector<16x1xf32>
    %c0_13 = arith.constant 0 : index
    %c0_14 = arith.constant 0 : index
    %25 = vector.load %arg8[%c0_13, %c0_14] : memref<16x1xf32, #tpu.memory_space<vmem>>, vector<16x1xf32>
    tpu.vector_store %arg8[%c0_13, %c0_14], %24 {strides = array<i32>} : memref<16x1xf32, #tpu.memory_space<vmem>>, vector<16x1xf32>,
    %c0_15 = arith.constant 0 : index
    %c0_16 = arith.constant 0 : index
    %26 = vector.load %arg7[%c0_15, %c0_16] : memref<16x1xf32, #tpu.memory_space<vmem>>, vector<16x1xf32>
    tpu.vector_store %arg7[%c0_15, %c0_16], %14 {strides = array<i32>} : memref<16x1xf32, #tpu.memory_space<vmem>>, vector<16x1xf32>,
    %c0_i32_17 = arith.constant 0 : i32
    %27 = arith.cmpi eq, %arg1, %c0_i32_17 : i32
    %28 = arith.extui %27 : i1 to i32
    %c0_i32_18 = arith.constant 0 : i32
    %29 = arith.cmpi ne, %28, %c0_i32_18 : i32
    scf.if %29 {
      %30 = arith.mulf %5, %5 : vector<16x4xf32>
      %cst_19 = arith.constant dense<0.000000e+00> : vector<16xf32>
      %31 = vector.multi_reduction <add>, %30, %cst_19 [1] : vector<16x4xf32> to vector<16xf32>
      %32 = vector.shape_cast %31 : vector<16xf32> to vector<16x1xf32>
      %c0_20 = arith.constant 0 : index
      %c0_21 = arith.constant 0 : index
      %33 = vector.load %arg7[%c0_20, %c0_21] : memref<16x1xf32, #tpu.memory_space<vmem>>, vector<16x1xf32>
      %c0_22 = arith.constant 0 : index
      %c0_23 = arith.constant 0 : index
      %34 = vector.load %arg8[%c0_22, %c0_23] : memref<16x1xf32, #tpu.memory_space<vmem>>, vector<16x1xf32>
      %35 = math.log %34 : vector<16x1xf32>
      %36 = arith.addf %33, %35 : vector<16x1xf32>
      %cst_24 = arith.constant -1.000000e-01 : f32
      %37 = vector.broadcast %cst_24 : f32 to vector<16x1xf32>
      %38 = arith.mulf %37, %36 : vector<16x1xf32>
      %39 = vector.broadcast %3 : f32 to vector<16x1xf32>
      %40 = arith.mulf %32, %39 : vector<16x1xf32>
      %41 = arith.addf %38, %40 : vector<16x1xf32>
      %42 = vector.broadcast %4 : f32 to vector<16x1xf32>
      %43 = arith.addf %41, %42 : vector<16x1xf32>
      %c0_25 = arith.constant 0 : index
      %c0_26 = arith.constant 0 : index
      %44 = vector.load %arg6[%c0_25, %c0_26] : memref<16x1xf32, #tpu.memory_space<vmem>>, vector<16x1xf32>
      tpu.vector_store %arg6[%c0_25, %c0_26], %43 {strides = array<i32>} : memref<16x1xf32, #tpu.memory_space<vmem>>, vector<16x1xf32>,
    } else {
    }
    return
  }
  func.func @transform_0(%arg0: i32, %arg1: i32) -> (i32, i32) {
    %c0_i32 = arith.constant 0 : i32
    %c0_i32_0 = arith.constant 0 : i32
    return %arg0, %c0_i32 : i32, i32
  }
  func.func @transform_1(%arg0: i32, %arg1: i32) -> (i32, i32) {
    %c0_i32 = arith.constant 0 : i32
    %c0_i32_0 = arith.constant 0 : i32
    return %c0_i32, %arg1 : i32, i32
  }
  func.func @transform_2(%arg0: i32, %arg1: i32) -> (i32, i32) {
    %c0_i32 = arith.constant 0 : i32
    %c0_i32_0 = arith.constant 0 : i32
    return %c0_i32, %arg1 : i32, i32
  }
  func.func @transform_3(%arg0: i32, %arg1: i32) -> i32 {
    %c0_i32 = arith.constant 0 : i32
    %c0_i32_0 = arith.constant 0 : i32
    return %c0_i32 : i32
  }
  func.func @transform_4(%arg0: i32, %arg1: i32) -> (i32, i32) {
    %c0_i32 = arith.constant 0 : i32
    %c0_i32_0 = arith.constant 0 : i32
    return %arg0, %c0_i32 : i32, i32
  }
}

</mosaic_0001>

<llo_original>
// kernel: tpu_custom_call.1
$region0: #{tpu_custom_call.1}
  #allocation0 [shape = 'u32[]', space=smem, size = 0x4, offset = 0x4, fixed_abs, tag = 'smem constant byte address 0x4 - core index']
  #allocation1 [shape = 'u32[72,128]{1,0:T(1,128)}', space=vmem, size = 0x9000, scoped, tag = 'internal scratch']
  #allocation2 [shape = 'f32[16,1]{1,0:T(8,128)}', space=vmem, size = 0x2000, scoped, tag = 'scratch operand']
  #allocation3 [shape = 'f32[16,1]{1,0:T(8,128)}', space=vmem, size = 0x2000, scoped, tag = 'scratch operand']
  %s0 = inlined_call_operand.vmem [shape: f32[16,4], index: 0, kind: input, shape index: {}]
  %s1 = inlined_call_operand.vmem [shape: f32[4,128], index: 1, kind: input, shape index: {}]
  %s2 = inlined_call_operand.vmem [shape: f32[1,128], index: 2, kind: input, shape index: {}]
  %s3 = inlined_call_operand.vmem [shape: f32[2], index: 3, kind: input, shape index: {}]
  %s4 = inlined_call_operand.vmem [shape: f32[16,1], index: 4, kind: output, shape index: {}]
  %s5 = sld [smem:[#allocation0]]
  $region38: #{tpu_custom_call.1} parent=0
    _
  %s7 = ssub.s32 1, %s5
  %s8 = scalar_select 0, %s7, %s5
  $region1: #{tpu_custom_call.1} parent=0
    #allocation4 [shape = 'u8[512]{0}', space=smem, size = 0x200, scoped, tag = 'input window, operand 3, single buffered']
    #allocation5 [shape = 's32[1]{0}', space=sflag, size = 0x4, scoped, tag = 'scoped memory for tpu_custom_call.1']
    %9 = vsyncpa [#allocation5], 0
    // Predicated region
    $region2: #{tpu_custom_call.1} parent=1 // pred_check
      _
    $region3: #{tpu_custom_call.1} parent=1 // pred_check_branch
      %11 = sbr.rel (0) target = $region5
    $region4: #{tpu_custom_call.1} parent=1 // pred_region
      _
    $region5: #{tpu_custom_call.1} parent=1 // pred_fallthru
      _
    // Predicated region
    $region6: #{tpu_custom_call.1} parent=1 // pred_check
      _
    $region7: #{tpu_custom_call.1} parent=1 // pred_check_branch
      %13 = sbr.rel (0) target = $region9
    $region8: #{tpu_custom_call.1} parent=1 // pred_region
      _
    $region9: #{tpu_custom_call.1} parent=1 // pred_fallthru
      _
    // Predicated region
    $region10: #{tpu_custom_call.1} parent=1 // pred_check
      _
    $region11: #{tpu_custom_call.1} parent=1 // pred_check_branch
      %15 = sbr.rel (0) target = $region13
    $region12: #{tpu_custom_call.1} parent=1 // pred_region
      _
    $region13: #{tpu_custom_call.1} parent=1 // pred_fallthru
      _
    // Predicated region
    $region14: #{tpu_custom_call.1} parent=1 // pred_check
      _
    $region15: #{tpu_custom_call.1} parent=1 // pred_check_branch
      %17 = sbr.rel (0) target = $region17
    $region16: #{tpu_custom_call.1} parent=1 // pred_region
      %19 = vsyncadd [#allocation5], 0
      %s21 = sshll.u32 %s3, 4
      %s22 = int_to_ptr.vmem [resolvable:$true] %s21
      %24 = dma.vmem_to_smem %s22, 16, [#allocation4], [#allocation5]
    $region17: #{tpu_custom_call.1} parent=1 // pred_fallthru
      _
    // Predicated region
    $region18: #{tpu_custom_call.1} parent=1 // pred_check
      _
    $region19: #{tpu_custom_call.1} parent=1 // pred_check_branch
      %26 = sbr.rel (0) target = $region21
    $region20: #{tpu_custom_call.1} parent=1 // pred_region
      %28 = dma.done [#allocation5], 16
    $region21: #{tpu_custom_call.1} parent=1 // pred_fallthru
      _
    %29 = sfence
    %p30 = scmp.eq.s32.totalorder 0, 0
    // Predicated region
    $region22: #{tpu_custom_call.1} parent=1 // pred_check
      %p31 = pneg %p30
    $region23: #{tpu_custom_call.1} parent=1 // pred_check_branch
      %33 = sbr.rel (%p31) target = $region25
    $region24: #{tpu_custom_call.1} parent=1 // pred_region
      %vm34 = vcmask 7168
      %35 = vst.msk [vmem:[#allocation2] sm:$0xff] %vm34, -1e+30
      %36 = vst.msk [vmem:[#allocation2 + $0x8] sm:$0xff] %vm34, -1e+30
      %37 = vst.msk [vmem:[#allocation3] sm:$0xff] %vm34, 0.0
      %38 = vst.msk [vmem:[#allocation3 + $0x8] sm:$0xff] %vm34, 0.0
    $region25: #{tpu_custom_call.1} parent=1 // pred_fallthru
      _
    %s39 = sld [smem:[#allocation4]]
    %s40 = sld [smem:[#allocation4 + $0x1]]
    %v41 = vld [vmem:[%s0] sm:$0xff]
    %v42 = vld [vmem:[%s0 + $0x8] sm:$0xff]
    %v43 = vld [vmem:[%s1] sm:$0xf]
    %v44 = vld [vmem:[%s2] sm:$0x1]
    %v46 = vperm.slane %v44, 0
    %vm48 = vcmask 31744
    %v50 = vsel %vm48, %v41, 0
    %v53 = vsel %vm48, %v42, 0
    %vm55 = vcmask 1043456
    %v57 = vsel %vm55, %v43, 0
    %59 = vmatpush.msra.mxu0 0.0
    %60 = vmatpush.msra.mxu0 0.0
    %61 = vmatpush.msra.mxu0 0.0
    %62 = vmatpush.msra.mxu0 0.0
    %63 = vmatpush.msra.mxu0 0.0
    %64 = vmatpush.msra.mxu0 0.0
    %65 = vmatpush.msra.mxu0 0.0
    %66 = vmatpush.msra.mxu0 0.0
    %67 = vmatpush.msra.mxu0 0.0
    %68 = vmatpush.msra.mxu0 0.0
    %69 = vmatpush.msra.mxu0 0.0
    %70 = vmatpush.msra.mxu0 0.0
    %71 = vmatpush.msra.mxu0 0.0
    %72 = vmatpush.msra.mxu0 0.0
    %73 = vmatpush.msra.mxu0 0.0
    %74 = vmatpush.msra.mxu0 %v57
    %75 = vmatmul.f32.gmra.mxu0 %v50
    %v76 = vpop.f32.mrf.mxu0
    %v77 = vadd.f32 %v46, %v76
    %78 = vmatmul.f32.gmra.mxu0 %v53
    %v79 = vpop.f32.mrf.mxu0
    %v80 = vadd.f32 %v46, %v79
    %81 = vdwg.mxu0
    %v82 = vld [vmem:[#allocation2] sm:$0xff]
    %v83 = vld [vmem:[#allocation2 + $0x8] sm:$0xff]
    %84 = vmax.xlane.f32.xlu0 %v77
    %v85 = vpop.xlane.xlu0 %84
    %86 = vmax.xlane.f32.xlu0 %v80
    %v87 = vpop.xlane.xlu0 %86
    %v88 = vmax.f32 %v82, %v85
    %v89 = vmax.f32 %v83, %v87
    %91 = vset.pattern.permute.xlu0 0
    %92 = vperm.xlu0 %91, %v88
    %v93 = vpop.permute.xlu0 %92
    %96 = vset.pattern.permute.xlu0 0
    %97 = vperm.xlu0 %96, %v89
    %v98 = vpop.permute.xlu0 %97
    %v100 = vsub.f32 %v77, %v93
    %v101 = vsub.f32 %v80, %v98
    %v102 = vmul.f32 %v100, 1.442695
    %v103 = vpow.pop %v102
    %v104 = vmul.f32 %v101, 1.442695
    %v105 = vpow.pop %v104
    %v106 = vsub.f32 %v82, %v88
    %v107 = vsub.f32 %v83, %v89
    %v108 = vmul.f32 %v106, 1.442695
    %v109 = vpow.pop %v108
    %v110 = vmul.f32 %v107, 1.442695
    %v111 = vpow.pop %v110
    %v112 = vld [vmem:[#allocation3] sm:$0xff]
    %v113 = vld [vmem:[#allocation3 + $0x8] sm:$0xff]
    %v114 = vmul.f32 %v109, %v112
    %v115 = vmul.f32 %v111, %v113
    %116 = vadd.xlane.f32.xlu0 %v103
    %v117 = vpop.xlane.xlu0 %116
    %118 = vadd.xlane.f32.xlu0 %v105
    %v119 = vpop.xlane.xlu0 %118
    %v120 = vadd.f32 %v114, %v117
    %v121 = vadd.f32 %v115, %v119
    %vm122 = vcmask 7168
    %123 = vst.msk [vmem:[#allocation3] sm:$0xff] %vm122, %v120
    %124 = vst.msk [vmem:[#allocation3 + $0x8] sm:$0xff] %vm122, %v121
    %125 = vst.msk [vmem:[#allocation2] sm:$0xff] %vm122, %v88
    %126 = vst.msk [vmem:[#allocation2 + $0x8] sm:$0xff] %vm122, %v89
    // Predicated region
    $region26: #{tpu_custom_call.1} parent=1 // pred_check
      %p127 = pneg %p30
    $region27: #{tpu_custom_call.1} parent=1 // pred_check_branch
      %129 = sbr.rel (%p127) target = $region29
    $region28: #{tpu_custom_call.1} parent=1 // pred_region
      %v130 = vmul.f32 %v41, %v41
      %v131 = vmul.f32 %v42, %v42
      %v132 = vsel %vm48, %v130, 0.0
      %133 = vadd.xlane.f32.xlu0 %v132
      %v134 = vpop.xlane.xlu0 %133
      %v135 = vsel %vm48, %v131, 0.0
      %136 = vadd.xlane.f32.xlu0 %v135
      %v137 = vpop.xlane.xlu0 %136
      %v138 = vld [vmem:[#allocation2] sm:$0xff]
      %v139 = vld [vmem:[#allocation2 + $0x8] sm:$0xff]
      %v140 = vld [vmem:[#allocation3] sm:$0xff]
      %v141 = vld [vmem:[#allocation3 + $0x8] sm:$0xff]
      %v142 = vlog2.pop %v140
      %v143 = vmul.f32 %v142, 0.6931472
      %v144 = vlog2.pop %v141
      %v145 = vmul.f32 %v144, 0.6931472
      %v146 = vadd.f32 %v138, %v143
      %v147 = vadd.f32 %v139, %v145
      %v148 = vmul.f32 %v146, -0.1
      %v149 = vmul.f32 %v147, -0.1
      %v150 = vstv %s39
      %v151 = vmul.f32 %v134, %v150
      %v152 = vmul.f32 %v137, %v150
      %v153 = vadd.f32 %v148, %v151
      %v154 = vadd.f32 %v149, %v152
      %v155 = vstv %s40
      %v156 = vadd.f32 %v153, %v155
      %v157 = vadd.f32 %v154, %v155
      %158 = vst.msk [vmem:[%s4] sm:$0xff] %vm122, %v156
      %159 = vst.msk [vmem:[%s4 + $0x8] sm:$0xff] %vm122, %v157
    $region29: #{tpu_custom_call.1} parent=1 // pred_fallthru
      _
    // Predicated region
    $region30: #{tpu_custom_call.1} parent=1 // pred_check
      _
    $region31: #{tpu_custom_call.1} parent=1 // pred_check_branch
      %161 = sbr.rel (0) target = $region33
    $region32: #{tpu_custom_call.1} parent=1 // pred_region
      _
    $region33: #{tpu_custom_call.1} parent=1 // pred_fallthru
      _
    // Predicated region
    $region34: #{tpu_custom_call.1} parent=1 // pred_check
      _
    $region35: #{tpu_custom_call.1} parent=1 // pred_check_branch
      %163 = sbr.rel (0) target = $region37
    $region36: #{tpu_custom_call.1} parent=1 // pred_region
      _
    $region37: #{tpu_custom_call.1} parent=1 // pred_fallthru
      _
    %164 = vsyncpa [#allocation5], 1

</llo_original>
